<compile_context>
chip_gen: v7x
topology: tpu7x:2x2x1
jax: 0.10.0
libtpu: 0.0.40
codegen_flags: <defaults>
</compile_context>

<pallas_src>
import functools
import math

import jax
import jax.numpy as jnp
import numpy as np
from jax.experimental import pallas as pl
from jax.experimental.pallas import tpu as pltpu


def build_grid(resolution):
    """Same construction as the PyTorch helper, returns (1, H, W, 4) f32."""
    ranges = [np.linspace(0.0, 1.0, num=res) for res in resolution]
    grid = np.meshgrid(*ranges, sparse=False, indexing="ij")
    grid = np.stack(grid, axis=-1)
    grid = np.reshape(grid, [resolution[0], resolution[1], -1])
    grid = np.expand_dims(grid, axis=0).astype(np.float32)
    return np.concatenate([grid, 1.0 - grid], axis=-1)  # (1, H, W, 4)


# --------------------------------------------------------------------------
# Kernel: out = x + (grid_fold @ W_blockdiag + bias_tiled), fully fused.
# --------------------------------------------------------------------------
def _fused_pos_add_kernel(g_ref, w_ref, b_ref, x_ref, o_ref):
    """All math in f32, result stored in the I/O dtype.

    g_ref : (tile_rows, f*4)       folded position grid (f32)
    w_ref : (f*4, f*hidden)        block-diagonal Linear weight (f32)
    b_ref : (1, f*hidden)          lane-tiled Linear bias (f32)
    x_ref : (tile_rows, f*hidden)  input tile (batch dim squeezed)
    o_ref : (tile_rows, f*hidden)  output tile
    """
    pos = jnp.dot(g_ref[...], w_ref[...],
                  preferred_element_type=jnp.float32,
                  precision=jax.lax.Precision.HIGHEST)
    o_ref[...] = (x_ref[...].astype(jnp.float32) + pos + b_ref[...]
                  ).astype(o_ref.dtype)


# --------------------------------------------------------------------------
# Wrapper helpers
# --------------------------------------------------------------------------
def _lane_fold(hidden, hw):
    """Smallest f with f*hidden a multiple of 128 (lane-dense stores)."""
    f = math.lcm(hidden, 128) // hidden
    # Fallback f=1 keeps correctness (masked 32-lane stores) if HW % f != 0.
    return f if hw % f == 0 else 1


def _target_tile_bytes():
    """Generation-aware per-tile byte target."""
    try:
        kind = jax.devices()[0].device_kind.lower()
    except Exception:
        kind = ""
    # v5e: slower HBM -> 2 MiB already amortizes the ~0.35us/step overhead
    # and stays comfortably inside scoped VMEM.  v6e / v7x: ~4 MiB tiles.
    if "v5e" in kind or "v5 lite" in kind:
        return 2 * 1024 * 1024
    return 4 * 1024 * 1024


def _pick_tile_rows(rows, lanes, itemsize, batch):
    """Fixed sublane-aligned tile height; the grid uses cdiv (ragged-safe)."""
    sub = max(1, 32 // itemsize)                       # 8 for f32, 16 for bf16
    cap = max(sub, (_target_tile_bytes() // (lanes * itemsize)) // sub * sub)
    tile_rows = min(cap, rows)                         # full-extent if tiny
    # v7x has 2 TensorCores: guarantee >= 2 parallel grid steps when B == 1.
    if batch == 1 and tile_rows >= rows and rows > sub:
        tile_rows = min(rows, pl.cdiv(pl.cdiv(rows, 2), sub) * sub)
    return tile_rows


# --------------------------------------------------------------------------
# Wrapper
# --------------------------------------------------------------------------
@functools.partial(jax.jit, static_argnames=("resolution",))
def soft_position_embed(inputs, grid_param, weight, bias, *, resolution):
    """inputs: (B, H, W, hidden); grid_param: (1, H, W, 4);
    weight: (hidden, 4) (PyTorch Linear layout); bias: (hidden,)."""
    B, H, W, hidden = inputs.shape
    assert (H, W) == tuple(resolution)
    HW = H * W
    itemsize = np.dtype(inputs.dtype).itemsize

    # Lane-dense fold: f spatial positions per row so f*hidden % 128 == 0.
    f = _lane_fold(hidden, HW)
    rows, lanes = HW // f, f * hidden

    # Fold the grid and expand the Linear to act block-diagonally on the fold:
    #   grid_fold[r] = concat(grid[r*f + j], j=0..f-1)            (f*4,)
    #   w_blk        = blockdiag(weight.T, ..., weight.T)         (f*4, f*hidden)
    #   b_blk        = tile(bias, f)                              (1,   f*hidden)
    # so grid_fold @ w_blk + b_blk == concat of per-position Linear outputs.
    grid_fold = grid_param.reshape(rows, f * 4).astype(jnp.float32)
    w_blk = jnp.kron(jnp.eye(f, dtype=jnp.float32),
                     weight.T.astype(jnp.float32))
    b_blk = jnp.tile(bias.astype(jnp.float32), (f,)).reshape(1, lanes)

    # TODO(synk): at integration time, check in HLO/xprof that this reshape
    # (and the final un-reshape) is layout-free; if XLA materializes a
    # relayout copy for hidden < 128, keep activations in the
    # (B, HW/f, f*hidden) layout across surrounding ops instead.
    x_dense = inputs.reshape(B, rows, lanes)

    tile_rows = _pick_tile_rows(rows, lanes, itemsize, B)
    n_rt = pl.cdiv(rows, tile_rows)                    # ragged last block OK
    tile_bytes = tile_rows * lanes * itemsize

    out_dense = pl.pallas_call(
        _fused_pos_add_kernel,
        out_shape=jax.ShapeDtypeStruct((B, rows, lanes), inputs.dtype),
        grid_spec=pltpu.PrefetchScalarGridSpec(
            num_scalar_prefetch=0,
            grid=(n_rt, B),       # batch innermost: grid/W/bias blocks reused
            in_specs=[
                # folded grid: follows the row tile only (shared across batch)
                pl.BlockSpec((tile_rows, f * 4), lambda r, b: (r, 0)),
                # block-diagonal weight + tiled bias: constant tiny blocks
                pl.BlockSpec((f * 4, lanes), lambda r, b: (0, 0)),
                pl.BlockSpec((1, lanes), lambda r, b: (0, 0)),
                # inputs: leading batch dim squeezed -> 2D kernel ref
                pl.BlockSpec((pl.Squeezed(), tile_rows, lanes),
                             lambda r, b: (b, r, 0)),
            ],
            out_specs=pl.BlockSpec((pl.Squeezed(), tile_rows, lanes),
                                   lambda r, b: (b, r, 0)),
        ),
        compiler_params=pltpu.CompilerParams(
            dimension_semantics=("parallel", "parallel"),
            vmem_limit_bytes=max(32 * 1024 * 1024, 8 * tile_bytes),
        ),
        cost_estimate=pl.CostEstimate(
            flops=2 * B * HW * 4 * hidden + B * HW * hidden,
            transcendentals=0,
            bytes_accessed=(2 * B * HW * hidden * itemsize   # x read + out write
                            + B * HW * 4 * 4                 # folded grid reads
                            + lanes * (f * 4 + 1) * 4)),     # weight + bias
    )(grid_fold, w_blk, b_blk, x_dense)

    return out_dense.reshape(B, H, W, hidden)


# --------------------------------------------------------------------------
if __name__ == "__main__":
    B, H, W, hidden = 2, 16, 16, 32
    resolution = (H, W)

    key = jax.random.PRNGKey(0)
    k_x, k_w, k_b = jax.random.split(key, 3)

    # Deterministic synthetic parameters (PyTorch Linear(4, hidden) shapes).
    weight = jax.random.normal(k_w, (hidden, 4), jnp.float32) * 0.1
    bias = jax.random.normal(k_b, (hidden,), jnp.float32) * 0.1
    grid_param = jnp.asarray(build_grid(resolution))          # (1, H, W, 4)

    inputs = jax.random.normal(k_x, (B, H, W, hidden), jnp.float32)

    out = soft_position_embed(inputs, grid_param, weight, bias,
                              resolution=resolution)
    out = jax.block_until_ready(out)

    # Host-side full-f32 reference.
    g_np = np.asarray(grid_param)
    pos_ref = np.einsum("bhwc,oc->bhwo", g_np, np.asarray(weight)) + np.asarray(bias)
    ref = np.asarray(inputs) + pos_ref
    np.testing.assert_allclose(np.asarray(out), ref, rtol=1e-5, atol=1e-5)
    print("KERNEL_OK")
</pallas_src>

<mosaic_0001>
module attributes {stable_mosaic.version = 11 : i64} {
  func.func @_fused_pos_add_kernel(%arg0: i32, %arg1: i32, %arg2: memref<64x16xf32, #tpu.memory_space<vmem>>, %arg3: memref<16x128xf32, #tpu.memory_space<vmem>>, %arg4: memref<1x128xf32, #tpu.memory_space<vmem>>, %arg5: memref<1x64x128xf32, #tpu.memory_space<vmem>>, %arg6: memref<1x64x128xf32, #tpu.memory_space<vmem>>) attributes {dimension_semantics = [#tpu.dimension_semantics<parallel>, #tpu.dimension_semantics<parallel>], iteration_bounds = array<i64: 1, 2>, scalar_prefetch = 0 : i64, scratch_operands = 0 : i64, tpu.core_type = #tpu.core_type<tc>, window_params = [{transform_indices = @transform_0, window_bounds = array<i64: 64, 16>}, {pipeline_mode = #tpu.pipeline_mode<synchronous>, transform_indices = @transform_1, window_bounds = array<i64: 16, 128>}, {pipeline_mode = #tpu.pipeline_mode<synchronous>, transform_indices = @transform_2, window_bounds = array<i64: 1, 128>}, {transform_indices = @transform_3, window_bounds = array<i64: 1, 64, 128>}, {transform_indices = @transform_4, window_bounds = array<i64: 1, 64, 128>}]} {
    %c0 = arith.constant 0 : index
    %c0_0 = arith.constant 0 : index
    %0 = vector.load %arg2[%c0, %c0_0] : memref<64x16xf32, #tpu.memory_space<vmem>>, vector<64x16xf32>
    %c0_1 = arith.constant 0 : index
    %c0_2 = arith.constant 0 : index
    %1 = vector.load %arg3[%c0_1, %c0_2] : memref<16x128xf32, #tpu.memory_space<vmem>>, vector<16x128xf32>
    %cst = arith.constant dense<0.000000e+00> : vector<64x128xf32>
    %2 = tpu.matmul %0, %1, %cst {dimension_numbers = #tpu.dot_dimension_numbers<[1], [0], [0], [1], [0, 0, 1, 1], [], []>, precision = #tpu.contract_precision<fp32>} : vector<64x16xf32>, vector<16x128xf32>, vector<64x128xf32> -> vector<64x128xf32>
    %c0_3 = arith.constant 0 : index
    %c0_4 = arith.constant 0 : index
    %c0_5 = arith.constant 0 : index
    %3 = vector.load %arg5[%c0_3, %c0_4, %c0_5] : memref<1x64x128xf32, #tpu.memory_space<vmem>>, vector<1x64x128xf32>
    %4 = vector.shape_cast %3 : vector<1x64x128xf32> to vector<64x128xf32>
    %5 = arith.addf %4, %2 : vector<64x128xf32>
    %c0_6 = arith.constant 0 : index
    %c0_7 = arith.constant 0 : index
    %6 = vector.load %arg4[%c0_6, %c0_7] : memref<1x128xf32, #tpu.memory_space<vmem>>, vector<1x128xf32>
    %7 = vector.broadcast %6 : vector<1x128xf32> to vector<64x128xf32>
    %8 = arith.addf %5, %7 : vector<64x128xf32>
    %c0_8 = arith.constant 0 : index
    %c0_9 = arith.constant 0 : index
    %c0_10 = arith.constant 0 : index
    %9 = vector.load %arg6[%c0_8, %c0_9, %c0_10] : memref<1x64x128xf32, #tpu.memory_space<vmem>>, vector<1x64x128xf32>
    %10 = vector.shape_cast %9 : vector<1x64x128xf32> to vector<64x128xf32>
    %11 = vector.shape_cast %8 : vector<64x128xf32> to vector<1x64x128xf32>
    tpu.vector_store %arg6[%c0_8, %c0_9, %c0_10], %11 {strides = array<i32>} : memref<1x64x128xf32, #tpu.memory_space<vmem>>, vector<1x64x128xf32>,
    return
  }
  func.func @transform_0(%arg0: i32, %arg1: i32) -> (i32, i32) {
    %c0_i32 = arith.constant 0 : i32
    %c0_i32_0 = arith.constant 0 : i32
    return %arg0, %c0_i32 : i32, i32
  }
  func.func @transform_1(%arg0: i32, %arg1: i32) -> (i32, i32) {
    %c0_i32 = arith.constant 0 : i32
    %c0_i32_0 = arith.constant 0 : i32
    %c0_i32_1 = arith.constant 0 : i32
    return %c0_i32, %c0_i32_0 : i32, i32
  }
  func.func @transform_2(%arg0: i32, %arg1: i32) -> (i32, i32) {
    %c0_i32 = arith.constant 0 : i32
    %c0_i32_0 = arith.constant 0 : i32
    %c0_i32_1 = arith.constant 0 : i32
    return %c0_i32, %c0_i32_0 : i32, i32
  }
  func.func @transform_3(%arg0: i32, %arg1: i32) -> (i32, i32, i32) {
    %c0_i32 = arith.constant 0 : i32
    %c0_i32_0 = arith.constant 0 : i32
    return %arg1, %arg0, %c0_i32 : i32, i32, i32
  }
  func.func @transform_4(%arg0: i32, %arg1: i32) -> (i32, i32, i32) {
    %c0_i32 = arith.constant 0 : i32
    %c0_i32_0 = arith.constant 0 : i32
    return %arg1, %arg0, %c0_i32 : i32, i32, i32
  }
}

</mosaic_0001>

<llo_original>
// kernel: tile.8
$region0: #{tile.8}
  #allocation0 [shape = 's32[1]{0}', space=sflag, size = 0x4, scoped, tag = 'scoped memory for tile.8']
  %s0 = inlined_call_operand.vmem [shape: f32[32], index: 0, kind: input, shape index: {}]
  %s1 = inlined_call_operand.vmem [shape: f32[4,32], index: 1, kind: output, shape index: {}]
  // Predicated region
  $region2: #{tile.8} parent=0 // pred_check
    _
  $region3: #{tile.8} parent=0 // pred_check_branch
    %3 = sbr.rel (0) target = $region5
  $region4: #{tile.8} parent=0 // pred_region
    _
  $region5: #{tile.8} parent=0 // pred_fallthru
    _
  %v4 = vld [vmem:[%s0] ss:$0 sm:$0xff]
  %5 = vst [vmem:[%s1] sm:$0xf] %v4

// kernel: tile.9
$region0: #{tile.9}
  %s0 = inlined_call_operand.vmem [shape: f32[4,32], index: 0, kind: input, shape index: {}]
  %s1 = inlined_call_operand.vmem [shape: f32[1,128], index: 1, kind: output, shape index: {}]
  $region1: #{tile.9} parent=0
    #allocation0 [shape = 'u8[4096]{0}', space=vmem, size = 0x1000, scoped, tag = 'scoped mem for output reshape']
    #allocation1 [shape = 'u8[4096]{0}', space=vmem, size = 0x1000, scoped, tag = 'scoped mem for input reshape']
    %s3 = sshllo.u32 0, 4
    %v4 = vld [vmem:[%s0] sm:%s3]
    %5 = vst [vmem:[#allocation1] sm:%s3] %v4
    %v6 = vld [vmem:[#allocation1] sm:$0x1]
    %vm7 = vcmask 261120
    %8 = vst.msk [vmem:[#allocation0] sm:$0x1] %vm7, %v6
    %s9 = scalar_lea.vmem [#allocation1], 3
    %v10 = vld [vmem:[%s9] sm:$0x1]
    %11 = vrot.lane.b32.xlu0 %v10, 96
    %v12 = vpop.permute.xlu0 %11
    %vm13 = vcmask 1048320
    %14 = vst.msk [vmem:[#allocation0] sm:$0x1] %vm13, %v12
    %s15 = scalar_lea.vmem [#allocation1], 2
    %v16 = vld [vmem:[%s15] sm:$0x1]
    %17 = vrot.lane.b32.xlu0 %v16, 64
    %v18 = vpop.permute.xlu0 %17
    %vm19 = vcmask 785920
    %20 = vst.msk [vmem:[#allocation0] sm:$0x1] %vm19, %v18
    %s21 = scalar_lea.vmem [#allocation1], 1
    %v22 = vld [vmem:[%s21] sm:$0x1]
    %23 = vrot.lane.b32.xlu0 %v22, 32
    %v24 = vpop.permute.xlu0 %23
    %vm25 = vcmask 523520
    %26 = vst.msk [vmem:[#allocation0] sm:$0x1] %vm25, %v24
    %s28 = sshllo.u32 0, 1
    %v30 = vld [vmem:[#allocation0] sm:%s28]
    %s31 = sshllo.u32 0, 1
    %32 = vst [vmem:[%s1] sm:%s31] %v30

// kernel: soft_position_embed.1
$region0: #{soft_position_embed.1}
  #allocation0 [shape = 'u32[]', space=smem, size = 0x4, offset = 0x4, fixed_abs, tag = 'smem constant byte address 0x4 - core index']
  #allocation1 [shape = 'u32[144,128]{1,0:T(1,128)}', space=vmem, size = 0x12000, scoped, tag = 'internal scratch']
  %s0 = inlined_call_operand.vmem [shape: f32[64,16], index: 0, kind: input, shape index: {}]
  %s1 = inlined_call_operand.vmem [shape: f32[16,128], index: 1, kind: input, shape index: {}]
  %s2 = inlined_call_operand.vmem [shape: f32[1,128], index: 2, kind: input, shape index: {}]
  %s3 = inlined_call_operand.vmem [shape: f32[2,64,128], index: 3, kind: input, shape index: {}]
  %s4 = inlined_call_operand.vmem [shape: f32[2,64,128], index: 4, kind: output, shape index: {}]
  %s5 = sld [smem:[#allocation0]]
  $region49: #{soft_position_embed.1} parent=0
    _
  %s7 = ssub.s32 1, %s5
  %s8 = scalar_select 0, %s7, %s5
  loop: start=0, step=1, limit=4
  $region2: #{soft_position_embed.1} parent=0 // loop_pre_header
    _
  $region3: #{soft_position_embed.1} parent=0 // loop_header
    %s10 = sphi 0, %s14
    %p11 = scmp.ge.s32.totalorder %s10, 4
    %s17 = sphi 0, %s29
    %s18 = sphi 0, %s25
    %s19 = sphi 0, %s17
    %s20 = sphi 0, %s18
    %s21 = sphi 0, %s19
    %s22 = sphi 0, %s20
    %s32 = sphi 0, %s34
    %s35 = sphi 0, %s32
    %s36 = sphi 0, %s35
    %s52 = sphi 0, %s36
    %s56 = sphi 0, %s56
    %s58 = sphi 0, %s56
    %s59 = sphi 0, %s58
    %s73 = sphi 0, %s59
    %s77 = sphi 0, %s77
    %s79 = sphi 0, %s77
    %s80 = sphi 0, %s79
    %s94 = sphi 0, %s80
    %s102 = sphi 0, %s104
    %s105 = sphi 0, %s102
    %s106 = sphi 0, %s105
    %s122 = sphi 0, %s106
    %s130 = sphi 0, %s132
    %s133 = sphi 0, %s130
    %s134 = sphi 0, %s133
    %s150 = sphi 0, %s134
  $region4: #{soft_position_embed.1} parent=0 // loop_header_branch
    %13 = sbr.rel (%p11) target = $region8
  $region5: #{soft_position_embed.1} parent=0 // loop_body
    %s15 = ssub.s32 %s10, 1
    %s16 = ssub.s32 %s10, 2
    %s23 = sadd.s32 1, %s18
    %p24 = scmp.ge.s32.totalorder %s23, 2
    %s25 = scalar_select %p24, 0, %s23
    %s26 = sadd.s32 1, %s17
    %s27 = scalar_select %p24, %s26, %s17
    %p28 = scmp.ge.s32.totalorder %s27, 1
    %s29 = scalar_select %p28, 0, %s27
    %s30 = ssub.s32 %s17, %s29
    %p31 = scmp.eq.s32.totalorder %s30, 0
    %s33 = sadd.s32 %s32, 1
    %s34 = scalar_select %p31, %s32, %s33
    %p37 = pneg %p31
    %p38 = scmp.eq.s32.totalorder %s10, 1
    %p39 = por %p37, %p38
    %p40 = scmp.ne.s32.totalorder %s32, %s35
    %p41 = scmp.eq.s32.totalorder %s10, 0
    %p42 = por %p40, %p41
    %p43 = scmp.ne.s32.totalorder %s32, %s35
    %p44 = scmp.eq.s32.totalorder %s15, 1
    %p45 = por %p43, %p44
    %p46 = scmp.ne.s32.totalorder %s35, %s36
    %p47 = scmp.eq.s32.totalorder %s15, 0
    %p48 = por %p46, %p47
    %p49 = scmp.ne.s32.totalorder %s35, %s36
    %p50 = scmp.eq.s32.totalorder %s16, 1
    %p51 = por %p49, %p50
    %p53 = scmp.ne.s32.totalorder %s36, %s52
    %p54 = scmp.eq.s32.totalorder %s16, 0
    %p55 = por %p53, %p54
    %s57 = sadd.s32 %s56, 1
    %p60 = scmp.eq.s32.totalorder %s10, 1
    %p61 = scmp.ne.s32.totalorder %s56, %s58
    %p62 = scmp.eq.s32.totalorder %s10, 0
    %p63 = por %p61, %p62
    %p64 = scmp.ne.s32.totalorder %s56, %s58
    %p65 = scmp.eq.s32.totalorder %s15, 1
    %p66 = por %p64, %p65
    %p67 = scmp.ne.s32.totalorder %s58, %s59
    %p68 = scmp.eq.s32.totalorder %s15, 0
    %p69 = por %p67, %p68
    %p70 = scmp.ne.s32.totalorder %s58, %s59
    %p71 = scmp.eq.s32.totalorder %s16, 1
    %p72 = por %p70, %p71
    %p74 = scmp.ne.s32.totalorder %s59, %s73
    %p75 = scmp.eq.s32.totalorder %s16, 0
    %p76 = por %p74, %p75
    %s78 = sadd.s32 %s77, 1
    %p81 = scmp.eq.s32.totalorder %s10, 1
    %p82 = scmp.ne.s32.totalorder %s77, %s79
    %p83 = scmp.eq.s32.totalorder %s10, 0
    %p84 = por %p82, %p83
    %p85 = scmp.ne.s32.totalorder %s77, %s79
    %p86 = scmp.eq.s32.totalorder %s15, 1
    %p87 = por %p85, %p86
    %p88 = scmp.ne.s32.totalorder %s79, %s80
    %p89 = scmp.eq.s32.totalorder %s15, 0
    %p90 = por %p88, %p89
    %p91 = scmp.ne.s32.totalorder %s79, %s80
    %p92 = scmp.eq.s32.totalorder %s16, 1
    %p93 = por %p91, %p92
    %p95 = scmp.ne.s32.totalorder %s80, %s94
    %p96 = scmp.eq.s32.totalorder %s16, 0
    %p97 = por %p95, %p96
    %s98 = ssub.s32 %s18, %s25
    %s99 = ssub.s32 %s17, %s29
    %s100 = sor.u32 %s98, %s99
    %p101 = scmp.eq.s32.totalorder %s100, 0
    %s103 = sadd.s32 %s102, 1
    %s104 = scalar_select %p101, %s102, %s103
    %p107 = pneg %p101
    %p108 = scmp.eq.s32.totalorder %s10, 1
    %p109 = por %p107, %p108
    %p110 = scmp.ne.s32.totalorder %s102, %s105
    %p111 = scmp.eq.s32.totalorder %s10, 0
    %p112 = por %p110, %p111
    %p113 = scmp.ne.s32.totalorder %s102, %s105
    %p114 = scmp.eq.s32.totalorder %s15, 1
    %p115 = por %p113, %p114
    %p116 = scmp.ne.s32.totalorder %s105, %s106
    %p117 = scmp.eq.s32.totalorder %s15, 0
    %p118 = por %p116, %p117
    %p119 = scmp.ne.s32.totalorder %s105, %s106
    %p120 = scmp.eq.s32.totalorder %s16, 1
    %p121 = por %p119, %p120
    %p123 = scmp.ne.s32.totalorder %s106, %s122
    %p124 = scmp.eq.s32.totalorder %s16, 0
    %p125 = por %p123, %p124
    %s126 = ssub.s32 %s18, %s25
    %s127 = ssub.s32 %s17, %s29
    %s128 = sor.u32 %s126, %s127
    %p129 = scmp.eq.s32.totalorder %s128, 0
    %s131 = sadd.s32 %s130, 1
    %s132 = scalar_select %p129, %s130, %s131
    %p135 = pneg %p129
    %p136 = scmp.eq.s32.totalorder %s10, 1
    %p137 = por %p135, %p136
    %p138 = scmp.ne.s32.totalorder %s130, %s133
    %p139 = scmp.eq.s32.totalorder %s10, 0
    %p140 = por %p138, %p139
    %p141 = scmp.ne.s32.totalorder %s130, %s133
    %p142 = scmp.eq.s32.totalorder %s15, 1
    %p143 = por %p141, %p142
    %p144 = scmp.ne.s32.totalorder %s133, %s134
    %p145 = scmp.eq.s32.totalorder %s15, 0
    %p146 = por %p144, %p145
    %p147 = scmp.ne.s32.totalorder %s133, %s134
    %p148 = scmp.eq.s32.totalorder %s16, 1
    %p149 = por %p147, %p148
    %p151 = scmp.ne.s32.totalorder %s134, %s150
    %p152 = scmp.eq.s32.totalorder %s16, 0
    %p153 = por %p151, %p152
    %p154 = scmp.le.s32.totalorder 1, %s10
    %p155 = scmp.lt.s32.totalorder %s10, 3
    %p156 = pnand %p154, %p155
    %p157 = pneg %p156
    // Predicated region
    $region9: #{soft_position_embed.1} parent=5 // pred_check
      _
    $region10: #{soft_position_embed.1} parent=5 // pred_check_branch
      %159 = sbr.rel (%p156) target = $region12
    $region11: #{soft_position_embed.1} parent=5 // pred_region
      %s160 = ssub.s32 %s10, 1
      // Predicated region
      $region13: #{soft_position_embed.1} parent=11 // pred_check
        %p161 = pneg %p48
      $region14: #{soft_position_embed.1} parent=11 // pred_check_branch
        %163 = sbr.rel (%p161) target = $region16
      $region15: #{soft_position_embed.1} parent=11 // pred_region
        %s164 = smul.u32 8, %s19
        %p165 = scmp.lt.s32.totalorder %s164, 7
        %s166 = scalar_select %p165, %s164, 7
        %s167 = smul.addr %s166, 8
        %s168 = scalar_lea.vmem %s0, %s167
        %s169 = smul.u32 8, %s19
      $region16: #{soft_position_embed.1} parent=11 // pred_fallthru
        _
      // Predicated region
      $region17: #{soft_position_embed.1} parent=11 // pred_check
        %p170 = pneg %p69
      $region18: #{soft_position_embed.1} parent=11 // pred_check_branch
        %172 = sbr.rel (%p170) target = $region20
      $region19: #{soft_position_embed.1} parent=11 // pred_region
        _
      $region20: #{soft_position_embed.1} parent=11 // pred_fallthru
        _
      // Predicated region
      $region21: #{soft_position_embed.1} parent=11 // pred_check
        %p173 = pneg %p90
      $region22: #{soft_position_embed.1} parent=11 // pred_check_branch
        %175 = sbr.rel (%p173) target = $region24
      $region23: #{soft_position_embed.1} parent=11 // pred_region
        _
      $region24: #{soft_position_embed.1} parent=11 // pred_fallthru
        _
    $region12: #{soft_position_embed.1} parent=5 // pred_fallthru
      _
    %p176 = scmp.lt.s32.totalorder %s10, 2
    // Predicated region
    $region25: #{soft_position_embed.1} parent=5 // pred_check
      %p177 = pneg %p176
    $region26: #{soft_position_embed.1} parent=5 // pred_check_branch
      %179 = sbr.rel (%p177) target = $region28
    $region27: #{soft_position_embed.1} parent=5 // pred_region
      // Predicated region
      $region29: #{soft_position_embed.1} parent=27 // pred_check
        %p180 = pneg %p112
      $region30: #{soft_position_embed.1} parent=27 // pred_check_branch
        %182 = sbr.rel (%p180) target = $region32
      $region31: #{soft_position_embed.1} parent=27 // pred_region
        %s183 = smul.u32 8, %s17
        %p184 = scmp.lt.s32.totalorder %s18, 1
        %s185 = scalar_select %p184, %s18, 1
        %p186 = scmp.lt.s32.totalorder %s183, 7
        %s187 = scalar_select %p186, %s183, 7
        %s188 = smul.addr %s185, 8
        %s189 = sadd.s32 %s187, %s188
        %s190 = smul.addr %s189, 8
        %s191 = scalar_lea.vmem %s3, %s190
        %s192 = smul.u32 8, %s17
      $region32: #{soft_position_embed.1} parent=27 // pred_fallthru
        _
    $region28: #{soft_position_embed.1} parent=5 // pred_fallthru
      _
    %p193 = scmp.le.s32.totalorder 1, %s10
    %p194 = scmp.lt.s32.totalorder %s10, 3
    %p195 = pnand %p193, %p194
    %p196 = pneg %p195
    // Predicated region
    $region33: #{soft_position_embed.1} parent=5 // pred_check
      _
    $region34: #{soft_position_embed.1} parent=5 // pred_check_branch
      %198 = sbr.rel (%p195) target = $region36
    $region35: #{soft_position_embed.1} parent=5 // pred_region
      %s199 = ssub.s32 %s10, 1
      %s200 = smul.u32 8, %s19
      %p201 = scmp.lt.s32.totalorder %s200, 7
      %s202 = scalar_select %p201, %s200, 7
      %s203 = smul.addr %s202, 8
      %s204 = scalar_lea.vmem %s0, %s203
      %p205 = pneg %p48
      %p206 = pneg %p45
      %p207 = pneg %p69
      %p208 = pneg %p66
      %p209 = pneg %p90
      %p210 = pneg %p87
      %s211 = smul.u32 8, %s19
      %p212 = scmp.lt.s32.totalorder %s20, 1
      %s213 = scalar_select %p212, %s20, 1
      %p214 = scmp.lt.s32.totalorder %s211, 7
      %s215 = scalar_select %p214, %s211, 7
      %s216 = smul.addr %s213, 8
      %s217 = sadd.s32 %s215, %s216
      %s218 = smul.addr %s217, 8
      %s219 = scalar_lea.vmem %s3, %s218
      %p220 = pneg %p118
      %p221 = pneg %p115
      %p222 = pneg %p146
      %p223 = pneg %p143
      %s224 = smul.u32 8, %s19
      %p225 = scmp.lt.s32.totalorder %s20, 1
      %s226 = scalar_select %p225, %s20, 1
      %p227 = scmp.lt.s32.totalorder %s224, 7
      %s228 = scalar_select %p227, %s224, 7
      %s229 = smul.addr %s226, 8
      %s230 = sadd.s32 %s228, %s229
      %s231 = smul.addr %s230, 8
      %s232 = scalar_lea.vmem %s4, %s231
      %s233 = smul.u32 8, %s19
      %p234 = scmp.lt.s32.totalorder %s233, 7
      %s235 = scalar_select %p234, %s233, 7
      %s236 = smul.addr %s235, 8
      %s237 = scalar_lea.vmem %s0, %s236
      %s238 = smul.u32 8, %s19
      %s239 = smul.u32 8, %s19
      %p240 = scmp.lt.s32.totalorder %s20, 1
      %s241 = scalar_select %p240, %s20, 1
      %p242 = scmp.lt.s32.totalorder %s239, 7
      %s243 = scalar_select %p242, %s239, 7
      %s244 = smul.addr %s241, 8
      %s245 = sadd.s32 %s243, %s244
      %s246 = smul.addr %s245, 8
      %s247 = scalar_lea.vmem %s3, %s246
      %s248 = smul.u32 8, %s19
      %s249 = smul.u32 8, %s19
      %p250 = scmp.lt.s32.totalorder %s20, 1
      %s251 = scalar_select %p250, %s20, 1
      %p252 = scmp.lt.s32.totalorder %s249, 7
      %s253 = scalar_select %p252, %s249, 7
      %s254 = smul.addr %s251, 8
      %s255 = sadd.s32 %s253, %s254
      %s256 = smul.addr %s255, 8
      %s257 = scalar_lea.vmem %s4, %s256
      %s258 = smul.u32 8, %s19
      %v259 = vld [vmem:[%s237] sm:$0xff]
      %v260 = vld [vmem:[%s237 + $0x8] sm:$0xff]
      %v261 = vld [vmem:[%s237 + $0x10] sm:$0xff]
      %v262 = vld [vmem:[%s237 + $0x18] sm:$0xff]
      %v263 = vld [vmem:[%s237 + $0x20] sm:$0xff]
      %v264 = vld [vmem:[%s237 + $0x28] sm:$0xff]
      %v265 = vld [vmem:[%s237 + $0x30] sm:$0xff]
      %v266 = vld [vmem:[%s237 + $0x38] sm:$0xff]
      %v267 = vld [vmem:[%s1] sm:$0xff]
      %v268 = vld [vmem:[%s1 + $0x8] sm:$0xff]
      %vm269 = vcmask 130048
      %v271 = vsel %vm269, %v259, 0
      %v274 = vsel %vm269, %v260, 0
      %v277 = vsel %vm269, %v261, 0
      %v280 = vsel %vm269, %v262, 0
      %v283 = vsel %vm269, %v263, 0
      %v286 = vsel %vm269, %v264, 0
      %v289 = vsel %vm269, %v265, 0
      %v292 = vsel %vm269, %v266, 0
      %294 = vmatprep.subr.mxu0 0.0
      %v295 = vand.u32 %v267, 4294901760
      %296 = vmatpush1.msra.mxu0 %v295
      %297 = vmatprep.subr.mxu0 0.0
      %v298 = vand.u32 %v268, 4294901760
      %299 = vmatpush1.msra.mxu0 %v298
      %300 = vmatprep.subr.mxu0 0.0
      %301 = vmatpush1.msra.mxu0 0.0
      %302 = vmatprep.subr.mxu0 0.0
      %303 = vmatpush1.msra.mxu0 0.0
      %304 = vmatprep.subr.mxu0 0.0
      %305 = vmatpush1.msra.mxu0 0.0
      %306 = vmatprep.subr.mxu0 0.0
      %307 = vmatpush1.msra.mxu0 0.0
      %308 = vmatprep.subr.mxu0 0.0
      %309 = vmatpush1.msra.mxu0 0.0
      %310 = vmatprep.subr.mxu0 0.0
      %311 = vmatpush1.msra.mxu0 0.0
      %312 = vmatprep.subr.mxu0 0.0
      %313 = vmatpush1.msra.mxu0 0.0
      %314 = vmatprep.subr.mxu0 0.0
      %315 = vmatpush1.msra.mxu0 0.0
      %316 = vmatprep.subr.mxu0 0.0
      %317 = vmatpush1.msra.mxu0 0.0
      %318 = vmatprep.subr.mxu0 0.0
      %319 = vmatpush1.msra.mxu0 0.0
      %320 = vmatprep.subr.mxu0 0.0
      %321 = vmatpush1.msra.mxu0 0.0
      %322 = vmatprep.subr.mxu0 0.0
      %323 = vmatpush1.msra.mxu0 0.0
      %324 = vmatprep.subr.mxu0 0.0
      %325 = vmatpush1.msra.mxu0 0.0
      %326 = vmatprep.subr.mxu0 0.0
      %327 = vmatpush1.msra.mxu0 0.0
      %328 = vmatprep.subr.mxu0 0.0
      %329 = vmatpush1.msra.mxu0 0.0
      %330 = vmatprep.subr.mxu0 0.0
      %331 = vmatpush1.msra.mxu0 0.0
      %332 = vmatprep.subr.mxu0 0.0
      %333 = vmatpush1.msra.mxu0 0.0
      %334 = vmatprep.subr.mxu0 0.0
      %335 = vmatpush1.msra.mxu0 0.0
      %336 = vmatprep.subr.mxu0 0.0
      %337 = vmatpush1.msra.mxu0 0.0
      %338 = vmatprep.subr.mxu0 0.0
      %339 = vmatpush1.msra.mxu0 0.0
      %340 = vmatprep.subr.mxu0 0.0
      %341 = vmatpush1.msra.mxu0 0.0
      %342 = vmatprep.subr.mxu0 0.0
      %343 = vmatpush1.msra.mxu0 0.0
      %344 = vmatprep.subr.mxu0 0.0
      %345 = vmatpush1.msra.mxu0 0.0
      %346 = vmatprep.subr.mxu0 0.0
      %347 = vmatpush1.msra.mxu0 0.0
      %348 = vmatprep.subr.mxu0 0.0
      %349 = vmatpush1.msra.mxu0 0.0
      %350 = vmatprep.subr.mxu0 0.0
      %351 = vmatpush1.msra.mxu0 0.0
      %352 = vmatprep.subr.mxu0 0.0
      %353 = vmatpush1.msra.mxu0 0.0
      %354 = vmatprep.subr.mxu0 0.0
      %355 = vmatpush1.msra.mxu0 0.0
      %356 = vmatprep.subr.mxu0 0.0
      %357 = vmatpush1.msra.mxu0 0.0
      %358 = vmatprep.subr.mxu0 0.0
      %359 = vmatpush1.msra.mxu0 0.0
      %360 = vmatprep.mubr.f32.mxu0 0.0
      %v361 = vand.u32 %v271, 4294901760
      %v362 = vsub.f32 %v271, %v361
      %v363 = vand.u32 %v362, 4294901760
      %v364 = vsub.f32 %v362, %v363
      %v365 = vand.u32 %v364, 4294901760
      %366 = vmatmul.mubr.f32.gmra.mrb[0].mxu0 %v365
      %v367 = vpop.f32.mrb[0].mxu0
      %v368 = vadd.f32 0.0, %v367
      %v369 = vpop.f32.mrb[0].mxu0
      %370 = vmatprep.mubr.f32.mxu0 0.0
      %v371 = vand.u32 %v274, 4294901760
      %v372 = vsub.f32 %v274, %v371
      %v373 = vand.u32 %v372, 4294901760
      %v374 = vsub.f32 %v372, %v373
      %v375 = vand.u32 %v374, 4294901760
      %376 = vmatmul.mubr.f32.gmra.mrb[0].mxu0 %v375
      %v377 = vpop.f32.mrb[0].mxu0
      %v378 = vadd.f32 0.0, %v377
      %v379 = vpop.f32.mrb[0].mxu0
      %380 = vmatprep.mubr.f32.mxu0 0.0
      %v381 = vand.u32 %v277, 4294901760
      %v382 = vsub.f32 %v277, %v381
      %v383 = vand.u32 %v382, 4294901760
      %v384 = vsub.f32 %v382, %v383
      %v385 = vand.u32 %v384, 4294901760
      %386 = vmatmul.mubr.f32.gmra.mrb[0].mxu0 %v385
      %v387 = vpop.f32.mrb[0].mxu0
      %v388 = vadd.f32 0.0, %v387
      %v389 = vpop.f32.mrb[0].mxu0
      %390 = vmatprep.mubr.f32.mxu0 0.0
      %v391 = vand.u32 %v280, 4294901760
      %v392 = vsub.f32 %v280, %v391
      %v393 = vand.u32 %v392, 4294901760
      %v394 = vsub.f32 %v392, %v393
      %v395 = vand.u32 %v394, 4294901760
      %396 = vmatmul.mubr.f32.gmra.mrb[0].mxu0 %v395
      %v397 = vpop.f32.mrb[0].mxu0
      %v398 = vadd.f32 0.0, %v397
      %v399 = vpop.f32.mrb[0].mxu0
      %400 = vmatprep.mubr.f32.mxu0 0.0
      %v401 = vand.u32 %v283, 4294901760
      %v402 = vsub.f32 %v283, %v401
      %v403 = vand.u32 %v402, 4294901760
      %v404 = vsub.f32 %v402, %v403
      %v405 = vand.u32 %v404, 4294901760
      %406 = vmatmul.mubr.f32.gmra.mrb[0].mxu0 %v405
      %v407 = vpop.f32.mrb[0].mxu0
      %v408 = vadd.f32 0.0, %v407
      %v409 = vpop.f32.mrb[0].mxu0
      %410 = vmatprep.mubr.f32.mxu0 0.0
      %v411 = vand.u32 %v286, 4294901760
      %v412 = vsub.f32 %v286, %v411
      %v413 = vand.u32 %v412, 4294901760
      %v414 = vsub.f32 %v412, %v413
      %v415 = vand.u32 %v414, 4294901760
      %416 = vmatmul.mubr.f32.gmra.mrb[0].mxu0 %v415
      %v417 = vpop.f32.mrb[0].mxu0
      %v418 = vadd.f32 0.0, %v417
      %v419 = vpop.f32.mrb[0].mxu0
      %420 = vmatprep.mubr.f32.mxu0 0.0
      %v421 = vand.u32 %v289, 4294901760
      %v422 = vsub.f32 %v289, %v421
      %v423 = vand.u32 %v422, 4294901760
      %v424 = vsub.f32 %v422, %v423
      %v425 = vand.u32 %v424, 4294901760
      %426 = vmatmul.mubr.f32.gmra.mrb[0].mxu0 %v425
      %v427 = vpop.f32.mrb[0].mxu0
      %v428 = vadd.f32 0.0, %v427
      %v429 = vpop.f32.mrb[0].mxu0
      %430 = vmatprep.mubr.f32.mxu0 0.0
      %v431 = vand.u32 %v292, 4294901760
      %v432 = vsub.f32 %v292, %v431
      %v433 = vand.u32 %v432, 4294901760
      %v434 = vsub.f32 %v432, %v433
      %v435 = vand.u32 %v434, 4294901760
      %436 = vmatmul.mubr.f32.gmra.mrb[0].mxu0 %v435
      %v437 = vpop.f32.mrb[0].mxu0
      %v438 = vadd.f32 0.0, %v437
      %v439 = vpop.f32.mrb[0].mxu0
      %440 = vdwg.mxu0
      %441 = vmatprep.subr.mxu0 0.0
      %v442 = vand.u32 %v267, 4294901760
      %v443 = vsub.f32 %v267, %v442
      %v444 = vand.u32 %v443, 4294901760
      %v445 = vsub.f32 %v443, %v444
      %v446 = vand.u32 %v445, 4294901760
      %447 = vmatpush1.msra.mxu0 %v446
      %448 = vmatprep.subr.mxu0 0.0
      %v449 = vand.u32 %v268, 4294901760
      %v450 = vsub.f32 %v268, %v449
      %v451 = vand.u32 %v450, 4294901760
      %v452 = vsub.f32 %v450, %v451
      %v453 = vand.u32 %v452, 4294901760
      %454 = vmatpush1.msra.mxu0 %v453
      %455 = vmatprep.subr.mxu0 0.0
      %456 = vmatpush1.msra.mxu0 0.0
      %457 = vmatprep.subr.mxu0 0.0
      %458 = vmatpush1.msra.mxu0 0.0
      %459 = vmatprep.subr.mxu0 0.0
      %460 = vmatpush1.msra.mxu0 0.0
      %461 = vmatprep.subr.mxu0 0.0
      %462 = vmatpush1.msra.mxu0 0.0
      %463 = vmatprep.subr.mxu0 0.0
      %464 = vmatpush1.msra.mxu0 0.0
      %465 = vmatprep.subr.mxu0 0.0
      %466 = vmatpush1.msra.mxu0 0.0
      %467 = vmatprep.subr.mxu0 0.0
      %468 = vmatpush1.msra.mxu0 0.0
      %469 = vmatprep.subr.mxu0 0.0
      %470 = vmatpush1.msra.mxu0 0.0
      %471 = vmatprep.subr.mxu0 0.0
      %472 = vmatpush1.msra.mxu0 0.0
      %473 = vmatprep.subr.mxu0 0.0
      %474 = vmatpush1.msra.mxu0 0.0
      %475 = vmatprep.subr.mxu0 0.0
      %476 = vmatpush1.msra.mxu0 0.0
      %477 = vmatprep.subr.mxu0 0.0
      %478 = vmatpush1.msra.mxu0 0.0
      %479 = vmatprep.subr.mxu0 0.0
      %480 = vmatpush1.msra.mxu0 0.0
      %481 = vmatprep.subr.mxu0 0.0
      %482 = vmatpush1.msra.mxu0 0.0
      %483 = vmatprep.subr.mxu0 0.0
      %484 = vmatpush1.msra.mxu0 0.0
      %485 = vmatprep.subr.mxu0 0.0
      %486 = vmatpush1.msra.mxu0 0.0
      %487 = vmatprep.subr.mxu0 0.0
      %488 = vmatpush1.msra.mxu0 0.0
      %489 = vmatprep.subr.mxu0 0.0
      %490 = vmatpush1.msra.mxu0 0.0
      %491 = vmatprep.subr.mxu0 0.0
      %492 = vmatpush1.msra.mxu0 0.0
      %493 = vmatprep.subr.mxu0 0.0
      %494 = vmatpush1.msra.mxu0 0.0
      %495 = vmatprep.subr.mxu0 0.0
      %496 = vmatpush1.msra.mxu0 0.0
      %497 = vmatprep.subr.mxu0 0.0
      %498 = vmatpush1.msra.mxu0 0.0
      %499 = vmatprep.subr.mxu0 0.0
      %500 = vmatpush1.msra.mxu0 0.0
      %501 = vmatprep.subr.mxu0 0.0
      %502 = vmatpush1.msra.mxu0 0.0
      %503 = vmatprep.subr.mxu0 0.0
      %504 = vmatpush1.msra.mxu0 0.0
      %505 = vmatprep.subr.mxu0 0.0
      %506 = vmatpush1.msra.mxu0 0.0
      %507 = vmatprep.subr.mxu0 0.0
      %508 = vmatpush1.msra.mxu0 0.0
      %509 = vmatprep.subr.mxu0 0.0
      %510 = vmatpush1.msra.mxu0 0.0
      %511 = vmatprep.subr.mxu0 0.0
      %512 = vmatpush1.msra.mxu0 0.0
      %513 = vmatprep.subr.mxu0 0.0
      %514 = vmatpush1.msra.mxu0 0.0
      %515 = vmatprep.mubr.f32.mxu0 0.0
      %v516 = vand.u32 %v271, 4294901760
      %517 = vmatmul.mubr.f32.gmra.mrb[0].mxu0 %v516
      %v518 = vpop.f32.mrb[0].mxu0
      %v519 = vadd.f32 %v368, %v518
      %v520 = vpop.f32.mrb[0].mxu0
      %521 = vmatprep.mubr.f32.mxu0 0.0
      %v522 = vand.u32 %v274, 4294901760
      %523 = vmatmul.mubr.f32.gmra.mrb[0].mxu0 %v522
      %v524 = vpop.f32.mrb[0].mxu0
      %v525 = vadd.f32 %v378, %v524
      %v526 = vpop.f32.mrb[0].mxu0
      %527 = vmatprep.mubr.f32.mxu0 0.0
      %v528 = vand.u32 %v277, 4294901760
      %529 = vmatmul.mubr.f32.gmra.mrb[0].mxu0 %v528
      %v530 = vpop.f32.mrb[0].mxu0
      %v531 = vadd.f32 %v388, %v530
      %v532 = vpop.f32.mrb[0].mxu0
      %533 = vmatprep.mubr.f32.mxu0 0.0
      %v534 = vand.u32 %v280, 4294901760
      %535 = vmatmul.mubr.f32.gmra.mrb[0].mxu0 %v534
      %v536 = vpop.f32.mrb[0].mxu0
      %v537 = vadd.f32 %v398, %v536
      %v538 = vpop.f32.mrb[0].mxu0
      %539 = vmatprep.mubr.f32.mxu0 0.0
      %v540 = vand.u32 %v283, 4294901760
      %541 = vmatmul.mubr.f32.gmra.mrb[0].mxu0 %v540
      %v542 = vpop.f32.mrb[0].mxu0
      %v543 = vadd.f32 %v408, %v542
      %v544 = vpop.f32.mrb[0].mxu0
      %545 = vmatprep.mubr.f32.mxu0 0.0
      %v546 = vand.u32 %v286, 4294901760
      %547 = vmatmul.mubr.f32.gmra.mrb[0].mxu0 %v546
      %v548 = vpop.f32.mrb[0].mxu0
      %v549 = vadd.f32 %v418, %v548
      %v550 = vpop.f32.mrb[0].mxu0
      %551 = vmatprep.mubr.f32.mxu0 0.0
      %v552 = vand.u32 %v289, 4294901760
      %553 = vmatmul.mubr.f32.gmra.mrb[0].mxu0 %v552
      %v554 = vpop.f32.mrb[0].mxu0
      %v555 = vadd.f32 %v428, %v554
      %v556 = vpop.f32.mrb[0].mxu0
      %557 = vmatprep.mubr.f32.mxu0 0.0
      %v558 = vand.u32 %v292, 4294901760
      %559 = vmatmul.mubr.f32.gmra.mrb[0].mxu0 %v558
      %v560 = vpop.f32.mrb[0].mxu0
      %v561 = vadd.f32 %v438, %v560
      %v562 = vpop.f32.mrb[0].mxu0
      %563 = vdwg.mxu0
      %564 = vmatprep.subr.mxu0 0.0
      %v565 = vand.u32 %v267, 4294901760
      %v566 = vsub.f32 %v267, %v565
      %567 = vmatpush1.msra.mxu0 %v566
      %568 = vmatprep.subr.mxu0 0.0
      %v569 = vand.u32 %v268, 4294901760
      %v570 = vsub.f32 %v268, %v569
      %571 = vmatpush1.msra.mxu0 %v570
      %572 = vmatprep.subr.mxu0 0.0
      %573 = vmatpush1.msra.mxu0 0.0
      %574 = vmatprep.subr.mxu0 0.0
      %575 = vmatpush1.msra.mxu0 0.0
      %576 = vmatprep.subr.mxu0 0.0
      %577 = vmatpush1.msra.mxu0 0.0
      %578 = vmatprep.subr.mxu0 0.0
      %579 = vmatpush1.msra.mxu0 0.0
      %580 = vmatprep.subr.mxu0 0.0
      %581 = vmatpush1.msra.mxu0 0.0
      %582 = vmatprep.subr.mxu0 0.0
      %583 = vmatpush1.msra.mxu0 0.0
      %584 = vmatprep.subr.mxu0 0.0
      %585 = vmatpush1.msra.mxu0 0.0
      %586 = vmatprep.subr.mxu0 0.0
      %587 = vmatpush1.msra.mxu0 0.0
      %588 = vmatprep.subr.mxu0 0.0
      %589 = vmatpush1.msra.mxu0 0.0
      %590 = vmatprep.subr.mxu0 0.0
      %591 = vmatpush1.msra.mxu0 0.0
      %592 = vmatprep.subr.mxu0 0.0
      %593 = vmatpush1.msra.mxu0 0.0
      %594 = vmatprep.subr.mxu0 0.0
      %595 = vmatpush1.msra.mxu0 0.0
      %596 = vmatprep.subr.mxu0 0.0
      %597 = vmatpush1.msra.mxu0 0.0
      %598 = vmatprep.subr.mxu0 0.0
      %599 = vmatpush1.msra.mxu0 0.0
      %600 = vmatprep.subr.mxu0 0.0
      %601 = vmatpush1.msra.mxu0 0.0
      %602 = vmatprep.subr.mxu0 0.0
      %603 = vmatpush1.msra.mxu0 0.0
      %604 = vmatprep.subr.mxu0 0.0
      %605 = vmatpush1.msra.mxu0 0.0
      %606 = vmatprep.subr.mxu0 0.0
      %607 = vmatpush1.msra.mxu0 0.0
      %608 = vmatprep.subr.mxu0 0.0
      %609 = vmatpush1.msra.mxu0 0.0
      %610 = vmatprep.subr.mxu0 0.0
      %611 = vmatpush1.msra.mxu0 0.0
      %612 = vmatprep.subr.mxu0 0.0
      %613 = vmatpush1.msra.mxu0 0.0
      %614 = vmatprep.subr.mxu0 0.0
      %615 = vmatpush1.msra.mxu0 0.0
      %616 = vmatprep.subr.mxu0 0.0
      %617 = vmatpush1.msra.mxu0 0.0
      %618 = vmatprep.subr.mxu0 0.0
      %619 = vmatpush1.msra.mxu0 0.0
      %620 = vmatprep.subr.mxu0 0.0
      %621 = vmatpush1.msra.mxu0 0.0
      %622 = vmatprep.subr.mxu0 0.0
      %623 = vmatpush1.msra.mxu0 0.0
      %624 = vmatprep.subr.mxu0 0.0
      %625 = vmatpush1.msra.mxu0 0.0
      %626 = vmatprep.subr.mxu0 0.0
      %627 = vmatpush1.msra.mxu0 0.0
      %628 = vmatprep.subr.mxu0 0.0
      %629 = vmatpush1.msra.mxu0 0.0
      %630 = vmatprep.subr.mxu0 0.0
      %631 = vmatpush1.msra.mxu0 0.0
      %632 = vmatprep.mubr.f32.mxu0 0.0
      %v633 = vand.u32 %v271, 4294901760
      %v634 = vsub.f32 %v271, %v633
      %635 = vmatmul.mubr.f32.gmra.mrb[0].mxu0 %v634
      %v636 = vpop.f32.mrb[0].mxu0
      %v637 = vadd.f32 %v519, %v636
      %v638 = vpop.f32.mrb[0].mxu0
      %639 = vmatprep.mubr.f32.mxu0 0.0
      %v640 = vand.u32 %v274, 4294901760
      %v641 = vsub.f32 %v274, %v640
      %642 = vmatmul.mubr.f32.gmra.mrb[0].mxu0 %v641
      %v643 = vpop.f32.mrb[0].mxu0
      %v644 = vadd.f32 %v525, %v643
      %v645 = vpop.f32.mrb[0].mxu0
      %646 = vmatprep.mubr.f32.mxu0 0.0
      %v647 = vand.u32 %v277, 4294901760
      %v648 = vsub.f32 %v277, %v647
      %649 = vmatmul.mubr.f32.gmra.mrb[0].mxu0 %v648
      %v650 = vpop.f32.mrb[0].mxu0
      %v651 = vadd.f32 %v531, %v650
      %v652 = vpop.f32.mrb[0].mxu0
      %653 = vmatprep.mubr.f32.mxu0 0.0
      %v654 = vand.u32 %v280, 4294901760
      %v655 = vsub.f32 %v280, %v654
      %656 = vmatmul.mubr.f32.gmra.mrb[0].mxu0 %v655
      %v657 = vpop.f32.mrb[0].mxu0
      %v658 = vadd.f32 %v537, %v657
      %v659 = vpop.f32.mrb[0].mxu0
      %660 = vmatprep.mubr.f32.mxu0 0.0
      %v661 = vand.u32 %v283, 4294901760
      %v662 = vsub.f32 %v283, %v661
      %663 = vmatmul.mubr.f32.gmra.mrb[0].mxu0 %v662
      %v664 = vpop.f32.mrb[0].mxu0
      %v665 = vadd.f32 %v543, %v664
      %v666 = vpop.f32.mrb[0].mxu0
      %667 = vmatprep.mubr.f32.mxu0 0.0
      %v668 = vand.u32 %v286, 4294901760
      %v669 = vsub.f32 %v286, %v668
      %670 = vmatmul.mubr.f32.gmra.mrb[0].mxu0 %v669
      %v671 = vpop.f32.mrb[0].mxu0
      %v672 = vadd.f32 %v549, %v671
      %v673 = vpop.f32.mrb[0].mxu0
      %674 = vmatprep.mubr.f32.mxu0 0.0
      %v675 = vand.u32 %v289, 4294901760
      %v676 = vsub.f32 %v289, %v675
      %677 = vmatmul.mubr.f32.gmra.mrb[0].mxu0 %v676
      %v678 = vpop.f32.mrb[0].mxu0
      %v679 = vadd.f32 %v555, %v678
      %v680 = vpop.f32.mrb[0].mxu0
      %681 = vmatprep.mubr.f32.mxu0 0.0
      %v682 = vand.u32 %v292, 4294901760
      %v683 = vsub.f32 %v292, %v682
      %684 = vmatmul.mubr.f32.gmra.mrb[0].mxu0 %v683
      %v685 = vpop.f32.mrb[0].mxu0
      %v686 = vadd.f32 %v561, %v685
      %v687 = vpop.f32.mrb[0].mxu0
      %688 = vdwg.mxu0
      %689 = vmatprep.subr.mxu0 0.0
      %v690 = vand.u32 %v267, 4294901760
      %691 = vmatpush1.msra.mxu0 %v690
      %692 = vmatprep.subr.mxu0 0.0
      %v693 = vand.u32 %v268, 4294901760
      %694 = vmatpush1.msra.mxu0 %v693
      %695 = vmatprep.subr.mxu0 0.0
      %696 = vmatpush1.msra.mxu0 0.0
      %697 = vmatprep.subr.mxu0 0.0
      %698 = vmatpush1.msra.mxu0 0.0
      %699 = vmatprep.subr.mxu0 0.0
      %700 = vmatpush1.msra.mxu0 0.0
      %701 = vmatprep.subr.mxu0 0.0
      %702 = vmatpush1.msra.mxu0 0.0
      %703 = vmatprep.subr.mxu0 0.0
      %704 = vmatpush1.msra.mxu0 0.0
      %705 = vmatprep.subr.mxu0 0.0
      %706 = vmatpush1.msra.mxu0 0.0
      %707 = vmatprep.subr.mxu0 0.0
      %708 = vmatpush1.msra.mxu0 0.0
      %709 = vmatprep.subr.mxu0 0.0
      %710 = vmatpush1.msra.mxu0 0.0
      %711 = vmatprep.subr.mxu0 0.0
      %712 = vmatpush1.msra.mxu0 0.0
      %713 = vmatprep.subr.mxu0 0.0
      %714 = vmatpush1.msra.mxu0 0.0
      %715 = vmatprep.subr.mxu0 0.0
      %716 = vmatpush1.msra.mxu0 0.0
      %717 = vmatprep.subr.mxu0 0.0
      %718 = vmatpush1.msra.mxu0 0.0
      %719 = vmatprep.subr.mxu0 0.0
      %720 = vmatpush1.msra.mxu0 0.0
      %721 = vmatprep.subr.mxu0 0.0
      %722 = vmatpush1.msra.mxu0 0.0
      %723 = vmatprep.subr.mxu0 0.0
      %724 = vmatpush1.msra.mxu0 0.0
      %725 = vmatprep.subr.mxu0 0.0
      %726 = vmatpush1.msra.mxu0 0.0
      %727 = vmatprep.subr.mxu0 0.0
      %728 = vmatpush1.msra.mxu0 0.0
      %729 = vmatprep.subr.mxu0 0.0
      %730 = vmatpush1.msra.mxu0 0.0
      %731 = vmatprep.subr.mxu0 0.0
      %732 = vmatpush1.msra.mxu0 0.0
      %733 = vmatprep.subr.mxu0 0.0
      %734 = vmatpush1.msra.mxu0 0.0
      %735 = vmatprep.subr.mxu0 0.0
      %736 = vmatpush1.msra.mxu0 0.0
      %737 = vmatprep.subr.mxu0 0.0
      %738 = vmatpush1.msra.mxu0 0.0
      %739 = vmatprep.subr.mxu0 0.0
      %740 = vmatpush1.msra.mxu0 0.0
      %741 = vmatprep.subr.mxu0 0.0
      %742 = vmatpush1.msra.mxu0 0.0
      %743 = vmatprep.subr.mxu0 0.0
      %744 = vmatpush1.msra.mxu0 0.0
      %745 = vmatprep.subr.mxu0 0.0
      %746 = vmatpush1.msra.mxu0 0.0
      %747 = vmatprep.subr.mxu0 0.0
      %748 = vmatpush1.msra.mxu0 0.0
      %749 = vmatprep.subr.mxu0 0.0
      %750 = vmatpush1.msra.mxu0 0.0
      %751 = vmatprep.subr.mxu0 0.0
      %752 = vmatpush1.msra.mxu0 0.0
      %753 = vmatprep.subr.mxu0 0.0
      %754 = vmatpush1.msra.mxu0 0.0
      %755 = vmatprep.mubr.f32.mxu0 0.0
      %v756 = vand.u32 %v271, 4294901760
      %v757 = vsub.f32 %v271, %v756
      %v758 = vand.u32 %v757, 4294901760
      %759 = vmatmul.mubr.f32.gmra.mrb[0].mxu0 %v758
      %v760 = vpop.f32.mrb[0].mxu0
      %v761 = vadd.f32 %v637, %v760
      %v762 = vpop.f32.mrb[0].mxu0
      %763 = vmatprep.mubr.f32.mxu0 0.0
      %v764 = vand.u32 %v274, 4294901760
      %v765 = vsub.f32 %v274, %v764
      %v766 = vand.u32 %v765, 4294901760
      %767 = vmatmul.mubr.f32.gmra.mrb[0].mxu0 %v766
      %v768 = vpop.f32.mrb[0].mxu0
      %v769 = vadd.f32 %v644, %v768
      %v770 = vpop.f32.mrb[0].mxu0
      %771 = vmatprep.mubr.f32.mxu0 0.0
      %v772 = vand.u32 %v277, 4294901760
      %v773 = vsub.f32 %v277, %v772
      %v774 = vand.u32 %v773, 4294901760
      %775 = vmatmul.mubr.f32.gmra.mrb[0].mxu0 %v774
      %v776 = vpop.f32.mrb[0].mxu0
      %v777 = vadd.f32 %v651, %v776
      %v778 = vpop.f32.mrb[0].mxu0
      %779 = vmatprep.mubr.f32.mxu0 0.0
      %v780 = vand.u32 %v280, 4294901760
      %v781 = vsub.f32 %v280, %v780
      %v782 = vand.u32 %v781, 4294901760
      %783 = vmatmul.mubr.f32.gmra.mrb[0].mxu0 %v782
      %v784 = vpop.f32.mrb[0].mxu0
      %v785 = vadd.f32 %v658, %v784
      %v786 = vpop.f32.mrb[0].mxu0
      %787 = vmatprep.mubr.f32.mxu0 0.0
      %v788 = vand.u32 %v283, 4294901760
      %v789 = vsub.f32 %v283, %v788
      %v790 = vand.u32 %v789, 4294901760
      %791 = vmatmul.mubr.f32.gmra.mrb[0].mxu0 %v790
      %v792 = vpop.f32.mrb[0].mxu0
      %v793 = vadd.f32 %v665, %v792
      %v794 = vpop.f32.mrb[0].mxu0
      %795 = vmatprep.mubr.f32.mxu0 0.0
      %v796 = vand.u32 %v286, 4294901760
      %v797 = vsub.f32 %v286, %v796
      %v798 = vand.u32 %v797, 4294901760
      %799 = vmatmul.mubr.f32.gmra.mrb[0].mxu0 %v798
      %v800 = vpop.f32.mrb[0].mxu0
      %v801 = vadd.f32 %v672, %v800
      %v802 = vpop.f32.mrb[0].mxu0
      %803 = vmatprep.mubr.f32.mxu0 0.0
      %v804 = vand.u32 %v289, 4294901760
      %v805 = vsub.f32 %v289, %v804
      %v806 = vand.u32 %v805, 4294901760
      %807 = vmatmul.mubr.f32.gmra.mrb[0].mxu0 %v806
      %v808 = vpop.f32.mrb[0].mxu0
      %v809 = vadd.f32 %v679, %v808
      %v810 = vpop.f32.mrb[0].mxu0
      %811 = vmatprep.mubr.f32.mxu0 0.0
      %v812 = vand.u32 %v292, 4294901760
      %v813 = vsub.f32 %v292, %v812
      %v814 = vand.u32 %v813, 4294901760
      %815 = vmatmul.mubr.f32.gmra.mrb[0].mxu0 %v814
      %v816 = vpop.f32.mrb[0].mxu0
      %v817 = vadd.f32 %v686, %v816
      %v818 = vpop.f32.mrb[0].mxu0
      %819 = vdwg.mxu0
      %820 = vmatprep.subr.mxu0 0.0
      %v821 = vand.u32 %v267, 4294901760
      %v822 = vsub.f32 %v267, %v821
      %v823 = vand.u32 %v822, 4294901760
      %824 = vmatpush1.msra.mxu0 %v823
      %825 = vmatprep.subr.mxu0 0.0
      %v826 = vand.u32 %v268, 4294901760
      %v827 = vsub.f32 %v268, %v826
      %v828 = vand.u32 %v827, 4294901760
      %829 = vmatpush1.msra.mxu0 %v828
      %830 = vmatprep.subr.mxu0 0.0
      %831 = vmatpush1.msra.mxu0 0.0
      %832 = vmatprep.subr.mxu0 0.0
      %833 = vmatpush1.msra.mxu0 0.0
      %834 = vmatprep.subr.mxu0 0.0
      %835 = vmatpush1.msra.mxu0 0.0
      %836 = vmatprep.subr.mxu0 0.0
      %837 = vmatpush1.msra.mxu0 0.0
      %838 = vmatprep.subr.mxu0 0.0
      %839 = vmatpush1.msra.mxu0 0.0
      %840 = vmatprep.subr.mxu0 0.0
      %841 = vmatpush1.msra.mxu0 0.0
      %842 = vmatprep.subr.mxu0 0.0
      %843 = vmatpush1.msra.mxu0 0.0
      %844 = vmatprep.subr.mxu0 0.0
      %845 = vmatpush1.msra.mxu0 0.0
      %846 = vmatprep.subr.mxu0 0.0
      %847 = vmatpush1.msra.mxu0 0.0
      %848 = vmatprep.subr.mxu0 0.0
      %849 = vmatpush1.msra.mxu0 0.0
      %850 = vmatprep.subr.mxu0 0.0
      %851 = vmatpush1.msra.mxu0 0.0
      %852 = vmatprep.subr.mxu0 0.0
      %853 = vmatpush1.msra.mxu0 0.0
      %854 = vmatprep.subr.mxu0 0.0
      %855 = vmatpush1.msra.mxu0 0.0
      %856 = vmatprep.subr.mxu0 0.0
      %857 = vmatpush1.msra.mxu0 0.0
      %858 = vmatprep.subr.mxu0 0.0
      %859 = vmatpush1.msra.mxu0 0.0
      %860 = vmatprep.subr.mxu0 0.0
      %861 = vmatpush1.msra.mxu0 0.0
      %862 = vmatprep.subr.mxu0 0.0
      %863 = vmatpush1.msra.mxu0 0.0
      %864 = vmatprep.subr.mxu0 0.0
      %865 = vmatpush1.msra.mxu0 0.0
      %866 = vmatprep.subr.mxu0 0.0
      %867 = vmatpush1.msra.mxu0 0.0
      %868 = vmatprep.subr.mxu0 0.0
      %869 = vmatpush1.msra.mxu0 0.0
      %870 = vmatprep.subr.mxu0 0.0
      %871 = vmatpush1.msra.mxu0 0.0
      %872 = vmatprep.subr.mxu0 0.0
      %873 = vmatpush1.msra.mxu0 0.0
      %874 = vmatprep.subr.mxu0 0.0
      %875 = vmatpush1.msra.mxu0 0.0
      %876 = vmatprep.subr.mxu0 0.0
      %877 = vmatpush1.msra.mxu0 0.0
      %878 = vmatprep.subr.mxu0 0.0
      %879 = vmatpush1.msra.mxu0 0.0
      %880 = vmatprep.subr.mxu0 0.0
      %881 = vmatpush1.msra.mxu0 0.0
      %882 = vmatprep.subr.mxu0 0.0
      %883 = vmatpush1.msra.mxu0 0.0
      %884 = vmatprep.subr.mxu0 0.0
      %885 = vmatpush1.msra.mxu0 0.0
      %886 = vmatprep.subr.mxu0 0.0
      %887 = vmatpush1.msra.mxu0 0.0
      %888 = vmatprep.subr.mxu0 0.0
      %889 = vmatpush1.msra.mxu0 0.0
      %890 = vmatprep.mubr.f32.mxu0 0.0
      %v891 = vand.u32 %v271, 4294901760
      %892 = vmatmul.mubr.f32.gmra.mrb[0].mxu0 %v891
      %v893 = vpop.f32.mrb[0].mxu0
      %v894 = vadd.f32 %v761, %v893
      %v895 = vpop.f32.mrb[0].mxu0
      %896 = vmatprep.mubr.f32.mxu0 0.0
      %v897 = vand.u32 %v274, 4294901760
      %898 = vmatmul.mubr.f32.gmra.mrb[0].mxu0 %v897
      %v899 = vpop.f32.mrb[0].mxu0
      %v900 = vadd.f32 %v769, %v899
      %v901 = vpop.f32.mrb[0].mxu0
      %902 = vmatprep.mubr.f32.mxu0 0.0
      %v903 = vand.u32 %v277, 4294901760
      %904 = vmatmul.mubr.f32.gmra.mrb[0].mxu0 %v903
      %v905 = vpop.f32.mrb[0].mxu0
      %v906 = vadd.f32 %v777, %v905
      %v907 = vpop.f32.mrb[0].mxu0
      %908 = vmatprep.mubr.f32.mxu0 0.0
      %v909 = vand.u32 %v280, 4294901760
      %910 = vmatmul.mubr.f32.gmra.mrb[0].mxu0 %v909
      %v911 = vpop.f32.mrb[0].mxu0
      %v912 = vadd.f32 %v785, %v911
      %v913 = vpop.f32.mrb[0].mxu0
      %914 = vmatprep.mubr.f32.mxu0 0.0
      %v915 = vand.u32 %v283, 4294901760
      %916 = vmatmul.mubr.f32.gmra.mrb[0].mxu0 %v915
      %v917 = vpop.f32.mrb[0].mxu0
      %v918 = vadd.f32 %v793, %v917
      %v919 = vpop.f32.mrb[0].mxu0
      %920 = vmatprep.mubr.f32.mxu0 0.0
      %v921 = vand.u32 %v286, 4294901760
      %922 = vmatmul.mubr.f32.gmra.mrb[0].mxu0 %v921
      %v923 = vpop.f32.mrb[0].mxu0
      %v924 = vadd.f32 %v801, %v923
      %v925 = vpop.f32.mrb[0].mxu0
      %926 = vmatprep.mubr.f32.mxu0 0.0
      %v927 = vand.u32 %v289, 4294901760
      %928 = vmatmul.mubr.f32.gmra.mrb[0].mxu0 %v927
      %v929 = vpop.f32.mrb[0].mxu0
      %v930 = vadd.f32 %v809, %v929
      %v931 = vpop.f32.mrb[0].mxu0
      %932 = vmatprep.mubr.f32.mxu0 0.0
      %v933 = vand.u32 %v292, 4294901760
      %934 = vmatmul.mubr.f32.gmra.mrb[0].mxu0 %v933
      %v935 = vpop.f32.mrb[0].mxu0
      %v936 = vadd.f32 %v817, %v935
      %v937 = vpop.f32.mrb[0].mxu0
      %938 = vdwg.mxu0
      %939 = vmatprep.subr.mxu0 0.0
      %v940 = vand.u32 %v267, 4294901760
      %941 = vmatpush1.msra.mxu0 %v940
      %942 = vmatprep.subr.mxu0 0.0
      %v943 = vand.u32 %v268, 4294901760
      %944 = vmatpush1.msra.mxu0 %v943
      %945 = vmatprep.subr.mxu0 0.0
      %946 = vmatpush1.msra.mxu0 0.0
      %947 = vmatprep.subr.mxu0 0.0
      %948 = vmatpush1.msra.mxu0 0.0
      %949 = vmatprep.subr.mxu0 0.0
      %950 = vmatpush1.msra.mxu0 0.0
      %951 = vmatprep.subr.mxu0 0.0
      %952 = vmatpush1.msra.mxu0 0.0
      %953 = vmatprep.subr.mxu0 0.0
      %954 = vmatpush1.msra.mxu0 0.0
      %955 = vmatprep.subr.mxu0 0.0
      %956 = vmatpush1.msra.mxu0 0.0
      %957 = vmatprep.subr.mxu0 0.0
      %958 = vmatpush1.msra.mxu0 0.0
      %959 = vmatprep.subr.mxu0 0.0
      %960 = vmatpush1.msra.mxu0 0.0
      %961 = vmatprep.subr.mxu0 0.0
      %962 = vmatpush1.msra.mxu0 0.0
      %963 = vmatprep.subr.mxu0 0.0
      %964 = vmatpush1.msra.mxu0 0.0
      %965 = vmatprep.subr.mxu0 0.0
      %966 = vmatpush1.msra.mxu0 0.0
      %967 = vmatprep.subr.mxu0 0.0
      %968 = vmatpush1.msra.mxu0 0.0
      %969 = vmatprep.subr.mxu0 0.0
      %970 = vmatpush1.msra.mxu0 0.0
      %971 = vmatprep.subr.mxu0 0.0
      %972 = vmatpush1.msra.mxu0 0.0
      %973 = vmatprep.subr.mxu0 0.0
      %974 = vmatpush1.msra.mxu0 0.0
      %975 = vmatprep.subr.mxu0 0.0
      %976 = vmatpush1.msra.mxu0 0.0
      %977 = vmatprep.subr.mxu0 0.0
      %978 = vmatpush1.msra.mxu0 0.0
      %979 = vmatprep.subr.mxu0 0.0
      %980 = vmatpush1.msra.mxu0 0.0
      %981 = vmatprep.subr.mxu0 0.0
      %982 = vmatpush1.msra.mxu0 0.0
      %983 = vmatprep.subr.mxu0 0.0
      %984 = vmatpush1.msra.mxu0 0.0
      %985 = vmatprep.subr.mxu0 0.0
      %986 = vmatpush1.msra.mxu0 0.0
      %987 = vmatprep.subr.mxu0 0.0
      %988 = vmatpush1.msra.mxu0 0.0
      %989 = vmatprep.subr.mxu0 0.0
      %990 = vmatpush1.msra.mxu0 0.0
      %991 = vmatprep.subr.mxu0 0.0
      %992 = vmatpush1.msra.mxu0 0.0
      %993 = vmatprep.subr.mxu0 0.0
      %994 = vmatpush1.msra.mxu0 0.0
      %995 = vmatprep.subr.mxu0 0.0
      %996 = vmatpush1.msra.mxu0 0.0
      %997 = vmatprep.subr.mxu0 0.0
      %998 = vmatpush1.msra.mxu0 0.0
      %999 = vmatprep.subr.mxu0 0.0
      %1000 = vmatpush1.msra.mxu0 0.0
      %1001 = vmatprep.subr.mxu0 0.0
      %1002 = vmatpush1.msra.mxu0 0.0
      %1003 = vmatprep.subr.mxu0 0.0
      %1004 = vmatpush1.msra.mxu0 0.0
      %1005 = vmatprep.mubr.f32.mxu0 0.0
      %v1006 = vand.u32 %v271, 4294901760
      %1007 = vmatmul.mubr.f32.gmra.mrb[0].mxu0 %v1006
      %v1008 = vpop.f32.mrb[0].mxu0
      %v1009 = vadd.f32 %v894, %v1008
      %v1010 = vpop.f32.mrb[0].mxu0
      %1011 = vmatprep.mubr.f32.mxu0 0.0
      %v1012 = vand.u32 %v274, 4294901760
      %1013 = vmatmul.mubr.f32.gmra.mrb[0].mxu0 %v1012
      %v1014 = vpop.f32.mrb[0].mxu0
      %v1015 = vadd.f32 %v900, %v1014
      %v1016 = vpop.f32.mrb[0].mxu0
      %1017 = vmatprep.mubr.f32.mxu0 0.0
      %v1018 = vand.u32 %v277, 4294901760
      %1019 = vmatmul.mubr.f32.gmra.mrb[0].mxu0 %v1018
      %v1020 = vpop.f32.mrb[0].mxu0
      %v1021 = vadd.f32 %v906, %v1020
      %v1022 = vpop.f32.mrb[0].mxu0
      %1023 = vmatprep.mubr.f32.mxu0 0.0
      %v1024 = vand.u32 %v280, 4294901760
      %1025 = vmatmul.mubr.f32.gmra.mrb[0].mxu0 %v1024
      %v1026 = vpop.f32.mrb[0].mxu0
      %v1027 = vadd.f32 %v912, %v1026
      %v1028 = vpop.f32.mrb[0].mxu0
      %1029 = vmatprep.mubr.f32.mxu0 0.0
      %v1030 = vand.u32 %v283, 4294901760
      %1031 = vmatmul.mubr.f32.gmra.mrb[0].mxu0 %v1030
      %v1032 = vpop.f32.mrb[0].mxu0
      %v1033 = vadd.f32 %v918, %v1032
      %v1034 = vpop.f32.mrb[0].mxu0
      %1035 = vmatprep.mubr.f32.mxu0 0.0
      %v1036 = vand.u32 %v286, 4294901760
      %1037 = vmatmul.mubr.f32.gmra.mrb[0].mxu0 %v1036
      %v1038 = vpop.f32.mrb[0].mxu0
      %v1039 = vadd.f32 %v924, %v1038
      %v1040 = vpop.f32.mrb[0].mxu0
      %1041 = vmatprep.mubr.f32.mxu0 0.0
      %v1042 = vand.u32 %v289, 4294901760
      %1043 = vmatmul.mubr.f32.gmra.mrb[0].mxu0 %v1042
      %v1044 = vpop.f32.mrb[0].mxu0
      %v1045 = vadd.f32 %v930, %v1044
      %v1046 = vpop.f32.mrb[0].mxu0
      %1047 = vmatprep.mubr.f32.mxu0 0.0
      %v1048 = vand.u32 %v292, 4294901760
      %1049 = vmatmul.mubr.f32.gmra.mrb[0].mxu0 %v1048
      %v1050 = vpop.f32.mrb[0].mxu0
      %v1051 = vadd.f32 %v936, %v1050
      %v1052 = vpop.f32.mrb[0].mxu0
      %1053 = vdwg.mxu0
      %v1054 = vld [vmem:[%s247] sm:$0xff]
      %v1055 = vld [vmem:[%s247 + $0x8] sm:$0xff]
      %v1056 = vld [vmem:[%s247 + $0x10] sm:$0xff]
      %v1057 = vld [vmem:[%s247 + $0x18] sm:$0xff]
      %v1058 = vld [vmem:[%s247 + $0x20] sm:$0xff]
      %v1059 = vld [vmem:[%s247 + $0x28] sm:$0xff]
      %v1060 = vld [vmem:[%s247 + $0x30] sm:$0xff]
      %v1061 = vld [vmem:[%s247 + $0x38] sm:$0xff]
      %v1062 = vadd.f32 %v1054, %v1009
      %v1063 = vadd.f32 %v1055, %v1015
      %v1064 = vadd.f32 %v1056, %v1021
      %v1065 = vadd.f32 %v1057, %v1027
      %v1066 = vadd.f32 %v1058, %v1033
      %v1067 = vadd.f32 %v1059, %v1039
      %v1068 = vadd.f32 %v1060, %v1045
      %v1069 = vadd.f32 %v1061, %v1051
      %v1070 = vld [vmem:[%s2] sm:$0x1]
      %v1072 = vlaneseq
      %v1073 = vshrl.u32 %v1072, 7
      %v1074 = vsub.s32 0, %v1073
      %v1075 = vrot.slane %v1070, %v1074
      %v1077 = vadd.f32 %v1062, %v1075
      %v1078 = vadd.f32 %v1063, %v1075
      %v1079 = vadd.f32 %v1064, %v1075
      %v1080 = vadd.f32 %v1065, %v1075
      %v1081 = vadd.f32 %v1066, %v1075
      %v1082 = vadd.f32 %v1067, %v1075
      %v1083 = vadd.f32 %v1068, %v1075
      %v1084 = vadd.f32 %v1069, %v1075
      %1085 = vst [vmem:[%s257] sm:$0xff] %v1077
      %1086 = vst [vmem:[%s257 + $0x8] sm:$0xff] %v1078
      %1087 = vst [vmem:[%s257 + $0x10] sm:$0xff] %v1079
      %1088 = vst [vmem:[%s257 + $0x18] sm:$0xff] %v1080
      %1089 = vst [vmem:[%s257 + $0x20] sm:$0xff] %v1081
      %1090 = vst [vmem:[%s257 + $0x28] sm:$0xff] %v1082
      %1091 = vst [vmem:[%s257 + $0x30] sm:$0xff] %v1083
      %1092 = vst [vmem:[%s257 + $0x38] sm:$0xff] %v1084
      %s1093 = smul.u32 8, %s19
      %p1094 = scmp.lt.s32.totalorder %s20, 1
      %s1095 = scalar_select %p1094, %s20, 1
      %p1096 = scmp.lt.s32.totalorder %s1093, 7
      %s1097 = scalar_select %p1096, %s1093, 7
      %s1098 = smul.addr %s1095, 8
      %s1099 = sadd.s32 %s1097, %s1098
      %s1100 = smul.addr %s1099, 8
      %s1101 = scalar_lea.vmem %s4, %s1100
      // Predicated region
      $region37: #{soft_position_embed.1} parent=35 // pred_check
        %p1102 = pneg %p143
      $region38: #{soft_position_embed.1} parent=35 // pred_check_branch
        %1104 = sbr.rel (%p1102) target = $region40
      $region39: #{soft_position_embed.1} parent=35 // pred_region
        %s1105 = smul.u32 8, %s19
      $region40: #{soft_position_embed.1} parent=35 // pred_fallthru
        _
    $region36: #{soft_position_embed.1} parent=5 // pred_fallthru
      _
    %p1106 = scmp.le.s32.totalorder 2, %s10
    // Predicated region
    $region41: #{soft_position_embed.1} parent=5 // pred_check
      %p1107 = pneg %p1106
    $region42: #{soft_position_embed.1} parent=5 // pred_check_branch
      %1109 = sbr.rel (%p1107) target = $region44
    $region43: #{soft_position_embed.1} parent=5 // pred_region
      %s1110 = ssub.s32 %s10, 2
      // Predicated region
      $region45: #{soft_position_embed.1} parent=43 // pred_check
        %p1111 = pneg %p149
      $region46: #{soft_position_embed.1} parent=43 // pred_check_branch
        %1113 = sbr.rel (%p1111) target = $region48
      $region47: #{soft_position_embed.1} parent=43 // pred_region
        %s1114 = smul.u32 8, %s21
        %p1115 = scmp.lt.s32.totalorder %s22, 1
        %s1116 = scalar_select %p1115, %s22, 1
        %p1117 = scmp.lt.s32.totalorder %s1114, 7
        %s1118 = scalar_select %p1117, %s1114, 7
        %s1119 = smul.addr %s1116, 8
        %s1120 = sadd.s32 %s1118, %s1119
        %s1121 = smul.addr %s1120, 8
        %s1122 = scalar_lea.vmem %s4, %s1121
      $region48: #{soft_position_embed.1} parent=43 // pred_fallthru
        _
    $region44: #{soft_position_embed.1} parent=5 // pred_fallthru
      _
  $region6: #{soft_position_embed.1} parent=0 // loop_footer
    %s14 = sadd.s32 1, %s10
  $region7: #{soft_position_embed.1} parent=0 // loop_footer_branch
    %9 = sbr.rel target = $region3
  $region8: #{soft_position_embed.1} parent=0 // loop_exit
    _

</llo_original>
